<compile_context>
chip_gen: v6e
topology: v6e:2x2x1
jax: 0.10.0
libtpu: 0.0.40
codegen_flags: <defaults>
</compile_context>

<pallas_src>
import functools

import jax
import jax.numpy as jnp
from jax.experimental import pallas as pl
from jax.experimental.pallas import tpu as pltpu


def _dice_sums_kernel(x_ref, t_ref, out_i_ref, out_d_ref, acc_i, acc_d,
                      *, normalization, hw, tile, k_per_part):
    b = pl.program_id(1)
    k = pl.program_id(2)
    first = jnp.logical_and(b == 0, k == 0)
    last = jnp.logical_and(b == pl.num_programs(1) - 1,
                           k == pl.num_programs(2) - 1)

    @pl.when(first)
    def _():
        acc_i[...] = jnp.zeros_like(acc_i)
        acc_d[...] = jnp.zeros_like(acc_d)

    x = x_ref[0].astype(jnp.float32)          # (C, tile)
    t = t_ref[0].astype(jnp.float32)          # (C, tile) — narrow dtype in HBM

    if normalization == 'sigmoid':
        # sigmoid(x) == 0.5 * tanh(0.5 * x) + 0.5 : a single EUP transcendental.
        p = 0.5 * jnp.tanh(0.5 * x) + 0.5
    elif normalization == 'softmax':
        # softmax over channels (dim=1 in NCHW == axis 0 of the block);
        # all C channels of a spatial location are co-resident in the block.
        p = jax.nn.softmax(x, axis=0)
    else:                                     # 'none'
        p = x

    if hw % tile != 0:
        # Only emitted when the lane sweep is ragged: zero out lanes past the
        # true extent so the (undefined) out-of-bounds block tail contributes
        # nothing to the sums.  For full blocks `rem >= tile` -> all-true mask.
        g = pl.program_id(0) * k_per_part + k             # global lane-tile idx
        rem = hw - g * tile
        lane = jax.lax.broadcasted_iota(jnp.int32, p.shape, 1)
        valid = lane < rem
        p = jnp.where(valid, p, 0.0)
        t = jnp.where(valid, t, 0.0)

    # Hot loop: pure elementwise VPU accumulation (no per-step lane reduce).
    acc_i[...] += p * t
    acc_d[...] += p * p + t * t

    @pl.when(last)
    def _():
        # Single cross-lane reduction in the epilogue only.
        out_i_ref[0] = jnp.sum(acc_i[...], axis=-1, keepdims=True)   # (C, 1)
        out_d_ref[0] = jnp.sum(acc_d[...], axis=-1, keepdims=True)   # (C, 1)


def _pick_tile(hw, c, max_block_bytes=2 * 1024 * 1024):
    """Lane tile for the (1, C, tile) blocks.

    Returns the full extent when it fits the per-block budget; otherwise a
    multiple of 128 (preferring one that divides HW so no masking is needed).
    """
    cap = max(128, max_block_bytes // (4 * c))      # lanes per block budget
    if hw <= cap:
        return hw                                   # one full-width block
    n = (cap // 128) * 128
    # Prefer a tile that divides HW (mask-free hot loop).
    m = n
    while m >= 128:
        if hw % m == 0:
            return m
        m -= 128
    return n                                        # ragged tail -> masked


def abstract_dice_loss(x, target, weight=None, normalization='sigmoid',
                       epsilon=1e-6, max_block_bytes=2 * 1024 * 1024):
    """Forward pass of _AbstractDiceLoss (standard Dice body), NCHW inputs."""
    assert normalization in ('sigmoid', 'softmax', 'none')
    B, C, H, W = x.shape
    HW = H * W

    # Free, contiguous reshapes — no channel-major transpose, no dtype upcast.
    x3 = x.reshape(B, C, HW)
    t3 = target.reshape(B, C, HW)

    tile = _pick_tile(HW, C, max_block_bytes)
    k_total = pl.cdiv(HW, tile)
    # Split the lane-tile sweep across up to 2 TensorCores (v7x megacore);
    # harmless (sequential) on single-core v5e/v6e.
    P = 2 if (k_total % 2 == 0 and k_total >= 2) else 1
    K = k_total // P

    kernel = functools.partial(_dice_sums_kernel, normalization=normalization,
                               hw=HW, tile=tile, k_per_part=K)

    sums_i, sums_d = pl.pallas_call(
        kernel,
        out_shape=(jax.ShapeDtypeStruct((P, C, 1), jnp.float32),
                   jax.ShapeDtypeStruct((P, C, 1), jnp.float32)),
        grid_spec=pltpu.PrefetchScalarGridSpec(
            num_scalar_prefetch=0,
            grid=(P, B, K),
            in_specs=[
                pl.BlockSpec((1, C, tile), lambda p, b, k: (b, 0, p * K + k)),
                pl.BlockSpec((1, C, tile), lambda p, b, k: (b, 0, p * K + k)),
            ],
            out_specs=(
                pl.BlockSpec((1, C, 1), lambda p, b, k: (p, 0, 0)),
                pl.BlockSpec((1, C, 1), lambda p, b, k: (p, 0, 0)),
            ),
            scratch_shapes=[
                pltpu.VMEM((C, tile), jnp.float32),   # intersect accumulator
                pltpu.VMEM((C, tile), jnp.float32),   # denominator accumulator
            ],
        ),
        compiler_params=pltpu.CompilerParams(
            dimension_semantics=("parallel", "arbitrary", "arbitrary"),
            vmem_limit_bytes=32 * 1024 * 1024),
    )(x3, t3)

    # Tiny epilogue in plain JAX: combine per-core partials, weight, clamp, mean.
    intersect = jnp.sum(sums_i, axis=0)[:, 0]     # (C,)
    denom = jnp.sum(sums_d, axis=0)[:, 0]         # (C,)
    if weight is not None:
        intersect = jnp.asarray(weight, jnp.float32).reshape(-1) * intersect
    per_channel_dice = 2.0 * intersect / jnp.maximum(denom, epsilon)
    return 1.0 - jnp.mean(per_channel_dice)


def _reference_loss(x, target, weight=None, normalization='sigmoid',
                    epsilon=1e-6):
    """Pure-JAX reference mirroring the PyTorch semantics."""
    if normalization == 'sigmoid':
        p = jax.nn.sigmoid(x)
    elif normalization == 'softmax':
        p = jax.nn.softmax(x, axis=1)
    else:
        p = x
    C = x.shape[1]
    pf = jnp.moveaxis(p, 1, 0).reshape(C, -1)
    tf = jnp.moveaxis(target.astype(jnp.float32), 1, 0).reshape(C, -1)
    intersect = jnp.sum(pf * tf, axis=-1)
    if weight is not None:
        intersect = jnp.asarray(weight, jnp.float32) * intersect
    denom = jnp.maximum(jnp.sum(pf * pf, -1) + jnp.sum(tf * tf, -1), epsilon)
    return 1.0 - jnp.mean(2.0 * intersect / denom)


if __name__ == "__main__":
    key = jax.random.PRNGKey(0)
    kx, kt, kx2, kt2 = jax.random.split(key, 4)

    # --- main check: module defaults (weight=None, normalization='sigmoid') ---
    B, C, H, W = 2, 4, 16, 16
    x = jax.random.normal(kx, (B, C, H, W), jnp.float32)            # raw logits
    # binary mask passed narrow (bf16 is exact for 0/1) — halves target traffic
    target = (jax.random.uniform(kt, (B, C, H, W)) > 0.5).astype(jnp.bfloat16)

    loss = abstract_dice_loss(x, target, weight=None, normalization='sigmoid')
    loss = jax.block_until_ready(loss)
    ref = _reference_loss(x, target, weight=None, normalization='sigmoid')
    assert jnp.allclose(loss, ref, atol=1e-5, rtol=1e-5), (loss, ref)

    # --- extra check: ragged lane extent exercises the masked-tail path ---
    H2, W2 = 15, 15                                   # HW=225, not /128
    x2 = jax.random.normal(kx2, (B, C, H2, W2), jnp.float32)
    t2 = (jax.random.uniform(kt2, (B, C, H2, W2)) > 0.5).astype(jnp.bfloat16)
    loss2 = abstract_dice_loss(x2, t2, weight=None, normalization='softmax',
                               max_block_bytes=4 * 128 * C)   # force tile=128
    loss2 = jax.block_until_ready(loss2)
    ref2 = _reference_loss(x2, t2, weight=None, normalization='softmax')
    assert jnp.allclose(loss2, ref2, atol=1e-5, rtol=1e-5), (loss2, ref2)

    print("KERNEL_OK")
</pallas_src>

<mosaic_0001>
module attributes {stable_mosaic.version = 11 : i64} {
  func.func @_dice_sums_kernel(%arg0: i32, %arg1: i32, %arg2: i32, %arg3: memref<1x4x256xf32, #tpu.memory_space<vmem>>, %arg4: memref<1x4x256xbf16, #tpu.memory_space<vmem>>, %arg5: memref<1x4x1xf32, #tpu.memory_space<vmem>>, %arg6: memref<1x4x1xf32, #tpu.memory_space<vmem>>, %arg7: memref<4x256xf32, #tpu.memory_space<vmem>>, %arg8: memref<4x256xf32, #tpu.memory_space<vmem>>) attributes {dimension_semantics = [#tpu.dimension_semantics<parallel>, #tpu.dimension_semantics<arbitrary>, #tpu.dimension_semantics<arbitrary>], iteration_bounds = array<i64: 1, 2, 1>, scalar_prefetch = 0 : i64, scratch_operands = 2 : i64, tpu.core_type = #tpu.core_type<tc>, window_params = [{transform_indices = @transform_0, window_bounds = array<i64: 1, 4, 256>}, {transform_indices = @transform_1, window_bounds = array<i64: 1, 4, 256>}, {transform_indices = @transform_2, window_bounds = array<i64: 1, 4, 1>}, {transform_indices = @transform_3, window_bounds = array<i64: 1, 4, 1>}]} {
    %c0_i32 = arith.constant 0 : i32
    %0 = arith.cmpi eq, %arg1, %c0_i32 : i32
    %c0_i32_0 = arith.constant 0 : i32
    %1 = arith.cmpi eq, %arg2, %c0_i32_0 : i32
    %2 = arith.andi %0, %1 : i1
    %c1_i32 = arith.constant 1 : i32
    %3 = arith.cmpi eq, %arg1, %c1_i32 : i32
    %c0_i32_1 = arith.constant 0 : i32
    %4 = arith.cmpi eq, %arg2, %c0_i32_1 : i32
    %5 = arith.andi %3, %4 : i1
    %6 = arith.extui %2 : i1 to i32
    %c0_i32_2 = arith.constant 0 : i32
    %7 = arith.cmpi ne, %6, %c0_i32_2 : i32
    scf.if %7 {
      %cst_19 = arith.constant 0.000000e+00 : f32
      %32 = vector.broadcast %cst_19 : f32 to vector<4x256xf32>
      %c0_20 = arith.constant 0 : index
      %c0_21 = arith.constant 0 : index
      %33 = vector.load %arg7[%c0_20, %c0_21] : memref<4x256xf32, #tpu.memory_space<vmem>>, vector<4x256xf32>
      tpu.vector_store %arg7[%c0_20, %c0_21], %32 {strides = array<i32>} : memref<4x256xf32, #tpu.memory_space<vmem>>, vector<4x256xf32>,
      %cst_22 = arith.constant 0.000000e+00 : f32
      %34 = vector.broadcast %cst_22 : f32 to vector<4x256xf32>
      %c0_23 = arith.constant 0 : index
      %c0_24 = arith.constant 0 : index
      %35 = vector.load %arg8[%c0_23, %c0_24] : memref<4x256xf32, #tpu.memory_space<vmem>>, vector<4x256xf32>
      tpu.vector_store %arg8[%c0_23, %c0_24], %34 {strides = array<i32>} : memref<4x256xf32, #tpu.memory_space<vmem>>, vector<4x256xf32>,
    } else {
    }
    %c0 = arith.constant 0 : index
    %c0_3 = arith.constant 0 : index
    %c0_4 = arith.constant 0 : index
    %8 = vector.load %arg3[%c0, %c0_3, %c0_4] : memref<1x4x256xf32, #tpu.memory_space<vmem>>, vector<1x4x256xf32>
    %9 = vector.shape_cast %8 : vector<1x4x256xf32> to vector<4x256xf32>
    %c0_5 = arith.constant 0 : index
    %c0_6 = arith.constant 0 : index
    %c0_7 = arith.constant 0 : index
    %10 = vector.load %arg4[%c0_5, %c0_6, %c0_7] : memref<1x4x256xbf16, #tpu.memory_space<vmem>>, vector<1x4x256xbf16>
    %11 = vector.shape_cast %10 : vector<1x4x256xbf16> to vector<4x256xbf16>
    %12 = arith.extf %11 : vector<4x256xbf16> to vector<4x256xf32>
    %cst = arith.constant 5.000000e-01 : f32
    %13 = vector.broadcast %cst : f32 to vector<4x256xf32>
    %14 = arith.mulf %13, %9 : vector<4x256xf32>
    %15 = math.tanh %14 : vector<4x256xf32>
    %cst_8 = arith.constant 5.000000e-01 : f32
    %16 = vector.broadcast %cst_8 : f32 to vector<4x256xf32>
    %17 = arith.mulf %16, %15 : vector<4x256xf32>
    %cst_9 = arith.constant 5.000000e-01 : f32
    %18 = vector.broadcast %cst_9 : f32 to vector<4x256xf32>
    %19 = arith.addf %17, %18 : vector<4x256xf32>
    %c0_10 = arith.constant 0 : index
    %c0_11 = arith.constant 0 : index
    %20 = vector.load %arg7[%c0_10, %c0_11] : memref<4x256xf32, #tpu.memory_space<vmem>>, vector<4x256xf32>
    %21 = arith.mulf %19, %12 : vector<4x256xf32>
    %22 = arith.addf %20, %21 : vector<4x256xf32>
    %c0_12 = arith.constant 0 : index
    %c0_13 = arith.constant 0 : index
    %23 = vector.load %arg7[%c0_12, %c0_13] : memref<4x256xf32, #tpu.memory_space<vmem>>, vector<4x256xf32>
    tpu.vector_store %arg7[%c0_12, %c0_13], %22 {strides = array<i32>} : memref<4x256xf32, #tpu.memory_space<vmem>>, vector<4x256xf32>,
    %c0_14 = arith.constant 0 : index
    %c0_15 = arith.constant 0 : index
    %24 = vector.load %arg8[%c0_14, %c0_15] : memref<4x256xf32, #tpu.memory_space<vmem>>, vector<4x256xf32>
    %25 = arith.mulf %19, %19 : vector<4x256xf32>
    %26 = arith.mulf %12, %12 : vector<4x256xf32>
    %27 = arith.addf %25, %26 : vector<4x256xf32>
    %28 = arith.addf %24, %27 : vector<4x256xf32>
    %c0_16 = arith.constant 0 : index
    %c0_17 = arith.constant 0 : index
    %29 = vector.load %arg8[%c0_16, %c0_17] : memref<4x256xf32, #tpu.memory_space<vmem>>, vector<4x256xf32>
    tpu.vector_store %arg8[%c0_16, %c0_17], %28 {strides = array<i32>} : memref<4x256xf32, #tpu.memory_space<vmem>>, vector<4x256xf32>,
    %30 = arith.extui %5 : i1 to i32
    %c0_i32_18 = arith.constant 0 : i32
    %31 = arith.cmpi ne, %30, %c0_i32_18 : i32
    scf.if %31 {
      %c0_19 = arith.constant 0 : index
      %c0_20 = arith.constant 0 : index
      %32 = vector.load %arg7[%c0_19, %c0_20] : memref<4x256xf32, #tpu.memory_space<vmem>>, vector<4x256xf32>
      %cst_21 = arith.constant dense<0.000000e+00> : vector<4xf32>
      %33 = vector.multi_reduction <add>, %32, %cst_21 [1] : vector<4x256xf32> to vector<4xf32>
      %34 = vector.shape_cast %33 : vector<4xf32> to vector<4x1xf32>
      %c0_22 = arith.constant 0 : index
      %c0_23 = arith.constant 0 : index
      %c0_24 = arith.constant 0 : index
      %35 = vector.load %arg5[%c0_22, %c0_23, %c0_24] : memref<1x4x1xf32, #tpu.memory_space<vmem>>, vector<1x4x1xf32>
      %36 = vector.shape_cast %35 : vector<1x4x1xf32> to vector<4x1xf32>
      %37 = vector.shape_cast %34 : vector<4x1xf32> to vector<1x4x1xf32>
      tpu.vector_store %arg5[%c0_22, %c0_23, %c0_24], %37 {strides = array<i32>} : memref<1x4x1xf32, #tpu.memory_space<vmem>>, vector<1x4x1xf32>,
      %c0_25 = arith.constant 0 : index
      %c0_26 = arith.constant 0 : index
      %38 = vector.load %arg8[%c0_25, %c0_26] : memref<4x256xf32, #tpu.memory_space<vmem>>, vector<4x256xf32>
      %cst_27 = arith.constant dense<0.000000e+00> : vector<4xf32>
      %39 = vector.multi_reduction <add>, %38, %cst_27 [1] : vector<4x256xf32> to vector<4xf32>
      %40 = vector.shape_cast %39 : vector<4xf32> to vector<4x1xf32>
      %c0_28 = arith.constant 0 : index
      %c0_29 = arith.constant 0 : index
      %c0_30 = arith.constant 0 : index
      %41 = vector.load %arg6[%c0_28, %c0_29, %c0_30] : memref<1x4x1xf32, #tpu.memory_space<vmem>>, vector<1x4x1xf32>
      %42 = vector.shape_cast %41 : vector<1x4x1xf32> to vector<4x1xf32>
      %43 = vector.shape_cast %40 : vector<4x1xf32> to vector<1x4x1xf32>
      tpu.vector_store %arg6[%c0_28, %c0_29, %c0_30], %43 {strides = array<i32>} : memref<1x4x1xf32, #tpu.memory_space<vmem>>, vector<1x4x1xf32>,
    } else {
    }
    return
  }
  func.func @transform_0(%arg0: i32, %arg1: i32, %arg2: i32) -> (i32, i32, i32) {
    %c1_i32 = arith.constant 1 : i32
    %0 = arith.muli %arg0, %c1_i32 : i32
    %1 = arith.addi %0, %arg2 : i32
    %c0_i32 = arith.constant 0 : i32
    %c0_i32_0 = arith.constant 0 : i32
    return %arg1, %c0_i32, %1 : i32, i32, i32
  }
  func.func @transform_1(%arg0: i32, %arg1: i32, %arg2: i32) -> (i32, i32, i32) {
    %c1_i32 = arith.constant 1 : i32
    %0 = arith.muli %arg0, %c1_i32 : i32
    %1 = arith.addi %0, %arg2 : i32
    %c0_i32 = arith.constant 0 : i32
    %c0_i32_0 = arith.constant 0 : i32
    return %arg1, %c0_i32, %1 : i32, i32, i32
  }
  func.func @transform_2(%arg0: i32, %arg1: i32, %arg2: i32) -> (i32, i32, i32) {
    %c0_i32 = arith.constant 0 : i32
    %c0_i32_0 = arith.constant 0 : i32
    %c0_i32_1 = arith.constant 0 : i32
    return %arg0, %c0_i32, %c0_i32_0 : i32, i32, i32
  }
  func.func @transform_3(%arg0: i32, %arg1: i32, %arg2: i32) -> (i32, i32, i32) {
    %c0_i32 = arith.constant 0 : i32
    %c0_i32_0 = arith.constant 0 : i32
    %c0_i32_1 = arith.constant 0 : i32
    return %arg0, %c0_i32, %c0_i32_0 : i32, i32, i32
  }
}

</mosaic_0001>

<llo_original>
// kernel: tpu_custom_call.1
$region0: #{tpu_custom_call.1}
  #allocation0 [shape = 'u32[]', space=smem, size = 0x4, offset = 0x4, fixed_abs, tag = 'smem constant byte address 0x4 - core index']
  #allocation1 [shape = 'u32[144,128]{1,0:T(1,128)}', space=vmem, size = 0x12000, scoped, tag = 'internal scratch']
  #allocation2 [shape = 'f32[4,256]{1,0:T(4,128)}', space=vmem, size = 0x1000, scoped, tag = 'scratch operand']
  #allocation3 [shape = 'f32[4,256]{1,0:T(4,128)}', space=vmem, size = 0x1000, scoped, tag = 'scratch operand']
  %s0 = inlined_call_operand.hbm [shape: f32[2,4,256], index: 0, kind: input, shape index: {}]
  %s1 = inlined_call_operand.hbm [shape: bf16[2,4,256], index: 1, kind: input, shape index: {}]
  %s2 = inlined_call_operand.vmem [shape: f32[1,4,1], index: 2, kind: output, shape index: {0}]
  %s3 = inlined_call_operand.vmem [shape: f32[1,4,1], index: 3, kind: output, shape index: {1}]
  %4 = xla_tuple %s2, %s3
  %s5 = sld [smem:[#allocation0]]
  $region65: #{tpu_custom_call.1} parent=0
    _
  %s7 = ssub.s32 1, %s5
  %s8 = scalar_select 0, %s7, %s5
  $region1: #{tpu_custom_call.1} parent=0
    #allocation4 [shape = 'u8[8192]{0}', space=vmem, size = 0x2000, scoped, tag = 'input window, operand 0']
    #allocation5 [shape = 's32[2]{0}', space=sflag, size = 0x8, scoped, tag = 'scoped memory for tpu_custom_call.1']
    #allocation6 [shape = 'u8[4096]{0}', space=vmem, size = 0x1000, scoped, tag = 'input window, operand 1']
    #allocation7 [shape = 's32[2]{0}', space=sflag, size = 0x8, scoped, tag = 'scoped memory for tpu_custom_call.1']
    %9 = vsyncpa [#allocation5], 0
    %s10 = scalar_lea.sflag [#allocation5], 1
    %11 = vsyncpa %s10, 0
    %12 = vsyncpa [#allocation7], 0
    %s13 = scalar_lea.sflag [#allocation7], 1
    %14 = vsyncpa %s13, 0
    loop: start=0, step=1, limit=4
    $region2: #{tpu_custom_call.1} parent=1 // loop_pre_header
      _
    $region3: #{tpu_custom_call.1} parent=1 // loop_header
      %s16 = sphi 0, %s20
      %p17 = scmp.ge.s32.totalorder %s16, 4
      %s23 = sphi 0, %s42
      %s24 = sphi 0, %s38
      %s25 = sphi 0, %s34
      %s26 = sphi 0, %s23
      %s27 = sphi 0, %s24
      %s28 = sphi 0, %s25
      %s29 = sphi 0, %s26
      %s30 = sphi 0, %s27
      %s31 = sphi 0, %s28
      %s49 = sphi 0, %s51
      %s52 = sphi 0, %s49
      %s53 = sphi 0, %s52
      %s69 = sphi 0, %s53
      %s79 = sphi 0, %s81
      %s82 = sphi 0, %s79
      %s83 = sphi 0, %s82
      %s99 = sphi 0, %s83
      %s105 = sphi 0, %s107
      %s108 = sphi 0, %s105
      %s109 = sphi 0, %s108
      %s125 = sphi 0, %s109
      %s131 = sphi 0, %s133
      %s134 = sphi 0, %s131
      %s135 = sphi 0, %s134
      %s151 = sphi 0, %s135
    $region4: #{tpu_custom_call.1} parent=1 // loop_header_branch
      %19 = sbr.rel (%p17) target = $region8
    $region5: #{tpu_custom_call.1} parent=1 // loop_body
      %s21 = ssub.s32 %s16, 1
      %s22 = ssub.s32 %s16, 2
      %s32 = sadd.s32 1, %s25
      %p33 = scmp.ge.s32.totalorder %s32, 1
      %s34 = scalar_select %p33, 0, %s32
      %s35 = sadd.s32 1, %s24
      %s36 = scalar_select %p33, %s35, %s24
      %p37 = scmp.ge.s32.totalorder %s36, 2
      %s38 = scalar_select %p37, 0, %s36
      %s39 = sadd.s32 1, %s23
      %s40 = scalar_select %p37, %s39, %s23
      %p41 = scmp.ge.s32.totalorder %s40, 1
      %s42 = scalar_select %p41, 0, %s40
      %s43 = sadd.s32 %s23, %s25
      %s44 = sadd.s32 %s42, %s34
      %s45 = ssub.s32 %s24, %s38
      %s46 = ssub.s32 %s43, %s44
      %s47 = sor.u32 %s45, %s46
      %p48 = scmp.eq.s32.totalorder %s47, 0
      %s50 = sadd.s32 %s49, 1
      %s51 = scalar_select %p48, %s49, %s50
      %p54 = pneg %p48
      %p55 = scmp.eq.s32.totalorder %s16, 1
      %p56 = por %p54, %p55
      %p57 = scmp.ne.s32.totalorder %s49, %s52
      %p58 = scmp.eq.s32.totalorder %s16, 0
      %p59 = por %p57, %p58
      %p60 = scmp.ne.s32.totalorder %s49, %s52
      %p61 = scmp.eq.s32.totalorder %s21, 1
      %p62 = por %p60, %p61
      %p63 = scmp.ne.s32.totalorder %s52, %s53
      %p64 = scmp.eq.s32.totalorder %s21, 0
      %p65 = por %p63, %p64
      %p66 = scmp.ne.s32.totalorder %s52, %s53
      %p67 = scmp.eq.s32.totalorder %s22, 1
      %p68 = por %p66, %p67
      %p70 = scmp.ne.s32.totalorder %s53, %s69
      %p71 = scmp.eq.s32.totalorder %s22, 0
      %p72 = por %p70, %p71
      %s73 = sadd.s32 %s23, %s25
      %s74 = sadd.s32 %s42, %s34
      %s75 = ssub.s32 %s24, %s38
      %s76 = ssub.s32 %s73, %s74
      %s77 = sor.u32 %s75, %s76
      %p78 = scmp.eq.s32.totalorder %s77, 0
      %s80 = sadd.s32 %s79, 1
      %s81 = scalar_select %p78, %s79, %s80
      %p84 = pneg %p78
      %p85 = scmp.eq.s32.totalorder %s16, 1
      %p86 = por %p84, %p85
      %p87 = scmp.ne.s32.totalorder %s79, %s82
      %p88 = scmp.eq.s32.totalorder %s16, 0
      %p89 = por %p87, %p88
      %p90 = scmp.ne.s32.totalorder %s79, %s82
      %p91 = scmp.eq.s32.totalorder %s21, 1
      %p92 = por %p90, %p91
      %p93 = scmp.ne.s32.totalorder %s82, %s83
      %p94 = scmp.eq.s32.totalorder %s21, 0
      %p95 = por %p93, %p94
      %p96 = scmp.ne.s32.totalorder %s82, %s83
      %p97 = scmp.eq.s32.totalorder %s22, 1
      %p98 = por %p96, %p97
      %p100 = scmp.ne.s32.totalorder %s83, %s99
      %p101 = scmp.eq.s32.totalorder %s22, 0
      %p102 = por %p100, %p101
      %s103 = ssub.s32 %s23, %s42
      %p104 = scmp.eq.s32.totalorder %s103, 0
      %s106 = sadd.s32 %s105, 1
      %s107 = scalar_select %p104, %s105, %s106
      %p110 = pneg %p104
      %p111 = scmp.eq.s32.totalorder %s16, 1
      %p112 = por %p110, %p111
      %p113 = scmp.ne.s32.totalorder %s105, %s108
      %p114 = scmp.eq.s32.totalorder %s16, 0
      %p115 = por %p113, %p114
      %p116 = scmp.ne.s32.totalorder %s105, %s108
      %p117 = scmp.eq.s32.totalorder %s21, 1
      %p118 = por %p116, %p117
      %p119 = scmp.ne.s32.totalorder %s108, %s109
      %p120 = scmp.eq.s32.totalorder %s21, 0
      %p121 = por %p119, %p120
      %p122 = scmp.ne.s32.totalorder %s108, %s109
      %p123 = scmp.eq.s32.totalorder %s22, 1
      %p124 = por %p122, %p123
      %p126 = scmp.ne.s32.totalorder %s109, %s125
      %p127 = scmp.eq.s32.totalorder %s22, 0
      %p128 = por %p126, %p127
      %s129 = ssub.s32 %s23, %s42
      %p130 = scmp.eq.s32.totalorder %s129, 0
      %s132 = sadd.s32 %s131, 1
      %s133 = scalar_select %p130, %s131, %s132
      %p136 = pneg %p130
      %p137 = scmp.eq.s32.totalorder %s16, 1
      %p138 = por %p136, %p137
      %p139 = scmp.ne.s32.totalorder %s131, %s134
      %p140 = scmp.eq.s32.totalorder %s16, 0
      %p141 = por %p139, %p140
      %p142 = scmp.ne.s32.totalorder %s131, %s134
      %p143 = scmp.eq.s32.totalorder %s21, 1
      %p144 = por %p142, %p143
      %p145 = scmp.ne.s32.totalorder %s134, %s135
      %p146 = scmp.eq.s32.totalorder %s21, 0
      %p147 = por %p145, %p146
      %p148 = scmp.ne.s32.totalorder %s134, %s135
      %p149 = scmp.eq.s32.totalorder %s22, 1
      %p150 = por %p148, %p149
      %p152 = scmp.ne.s32.totalorder %s135, %s151
      %p153 = scmp.eq.s32.totalorder %s22, 0
      %p154 = por %p152, %p153
      %p155 = scmp.le.s32.totalorder 1, %s16
      %p156 = scmp.lt.s32.totalorder %s16, 3
      %p157 = pnand %p155, %p156
      %p158 = pneg %p157
      // Predicated region
      $region9: #{tpu_custom_call.1} parent=5 // pred_check
        _
      $region10: #{tpu_custom_call.1} parent=5 // pred_check_branch
        %160 = sbr.rel (%p157) target = $region12
      $region11: #{tpu_custom_call.1} parent=5 // pred_region
        %s161 = ssub.s32 %s16, 1
      $region12: #{tpu_custom_call.1} parent=5 // pred_fallthru
        _
      %p162 = scmp.lt.s32.totalorder %s16, 2
      // Predicated region
      $region13: #{tpu_custom_call.1} parent=5 // pred_check
        %p163 = pneg %p162
      $region14: #{tpu_custom_call.1} parent=5 // pred_check_branch
        %165 = sbr.rel (%p163) target = $region16
      $region15: #{tpu_custom_call.1} parent=5 // pred_region
        // Predicated region
        $region17: #{tpu_custom_call.1} parent=15 // pred_check
          %p166 = pneg %p59
        $region18: #{tpu_custom_call.1} parent=15 // pred_check_branch
          %168 = sbr.rel (%p166) target = $region20
        $region19: #{tpu_custom_call.1} parent=15 // pred_region
          %s169 = sand.u32 %s49, 1
          %s170 = scalar_lea.sflag [#allocation5], %s169
          %s171 = sand.u32 %s49, 1
          %s172 = smul.addr %s171, 8
          %s173 = scalar_lea.vmem [#allocation4], %s172
          %s174 = sadd.s32 %s23, %s25
          %s175 = smul.u32 2, %s174
          %s177 = ssub.s32 128, 128
          %178 = vsyncadd %s170, %s177
          %s179 = smul.addr %s24, 2
          %s180 = sadd.s32 %s175, %s179
          %s181 = smul.addr %s180, 64
          %s182 = scalar_lea.hbm %s0, %s181
          %s184 = sshll.u32 %s173, 4
          %s185 = int_to_ptr.vmem [resolvable:$true] %s184
          %187 = dma.hbm_to_vmem [thread:$0]  %s182, 128, %s185, %s170
        $region20: #{tpu_custom_call.1} parent=15 // pred_fallthru
          _
        // Predicated region
        $region21: #{tpu_custom_call.1} parent=15 // pred_check
          %p188 = pneg %p89
        $region22: #{tpu_custom_call.1} parent=15 // pred_check_branch
          %190 = sbr.rel (%p188) target = $region24
        $region23: #{tpu_custom_call.1} parent=15 // pred_region
          %s191 = sand.u32 %s79, 1
          %s192 = scalar_lea.sflag [#allocation7], %s191
          %s193 = sand.u32 %s79, 1
          %s194 = smul.addr %s193, 4
          %s195 = scalar_lea.vmem [#allocation6], %s194
          %s196 = sadd.s32 %s23, %s25
          %s197 = smul.u32 2, %s196
          %s199 = ssub.s32 64, 64
          %200 = vsyncadd %s192, %s199
          %s201 = smul.addr %s24, 2
          %s202 = sadd.s32 %s197, %s201
          %s203 = smul.addr %s202, 32
          %s204 = scalar_lea.hbm %s1, %s203
          %s206 = sshll.u32 %s195, 4
          %s207 = int_to_ptr.vmem [resolvable:$true] %s206
          %209 = dma.hbm_to_vmem [thread:$0]  %s204, 64, %s207, %s192
        $region24: #{tpu_custom_call.1} parent=15 // pred_fallthru
          _
      $region16: #{tpu_custom_call.1} parent=5 // pred_fallthru
        _
      %p210 = scmp.le.s32.totalorder 1, %s16
      %p211 = scmp.lt.s32.totalorder %s16, 3
      %p212 = pnand %p210, %p211
      %p213 = pneg %p212
      // Predicated region
      $region25: #{tpu_custom_call.1} parent=5 // pred_check
        _
      $region26: #{tpu_custom_call.1} parent=5 // pred_check_branch
        %215 = sbr.rel (%p212) target = $region28
      $region27: #{tpu_custom_call.1} parent=5 // pred_region
        %s216 = ssub.s32 %s16, 1
        %s217 = sand.u32 %s52, 1
        %s218 = scalar_lea.sflag [#allocation5], %s217
        %s219 = sand.u32 %s52, 1
        %s220 = smul.addr %s219, 8
        %s221 = scalar_lea.vmem [#allocation4], %s220
        // Predicated region
        $region29: #{tpu_custom_call.1} parent=27 // pred_check
          %p222 = pneg %p65
        $region30: #{tpu_custom_call.1} parent=27 // pred_check_branch
          %224 = sbr.rel (%p222) target = $region32
        $region31: #{tpu_custom_call.1} parent=27 // pred_region
          %225 = dma.done %s218, 128
        $region32: #{tpu_custom_call.1} parent=27 // pred_fallthru
          _
        %s226 = sand.u32 %s82, 1
        %s227 = scalar_lea.sflag [#allocation7], %s226
        %s228 = sand.u32 %s82, 1
        %s229 = smul.addr %s228, 4
        %s230 = scalar_lea.vmem [#allocation6], %s229
        // Predicated region
        $region33: #{tpu_custom_call.1} parent=27 // pred_check
          %p231 = pneg %p95
        $region34: #{tpu_custom_call.1} parent=27 // pred_check_branch
          %233 = sbr.rel (%p231) target = $region36
        $region35: #{tpu_custom_call.1} parent=27 // pred_region
          %234 = dma.done %s227, 64
        $region36: #{tpu_custom_call.1} parent=27 // pred_fallthru
          _
        %s235 = sand.u32 %s52, 1
        %s236 = scalar_lea.sflag [#allocation5], %s235
        %s237 = sand.u32 %s52, 1
        %s238 = smul.addr %s237, 8
        %s239 = scalar_lea.vmem [#allocation4], %s238
        %p240 = pneg %p65
        %p241 = pneg %p62
        %s242 = sand.u32 %s82, 1
        %s243 = scalar_lea.sflag [#allocation7], %s242
        %s244 = sand.u32 %s82, 1
        %s245 = smul.addr %s244, 4
        %s246 = scalar_lea.vmem [#allocation6], %s245
        %p247 = pneg %p95
        %p248 = pneg %p92
        %p249 = pneg %p121
        %p250 = pneg %p118
        %p251 = scmp.lt.s32.totalorder %s26, 0
        %s252 = scalar_select %p251, %s26, 0
        %s253 = smul.addr %s252, 4
        %s254 = scalar_lea.vmem %s2, %s253
        %p255 = pneg %p147
        %p256 = pneg %p144
        %p257 = scmp.lt.s32.totalorder %s26, 0
        %s258 = scalar_select %p257, %s26, 0
        %s259 = smul.addr %s258, 4
        %s260 = scalar_lea.vmem %s3, %s259
        %s261 = sadd.s32 %s26, %s28
        %s262 = smul.u32 2, %s261
        %s263 = sadd.s32 %s26, %s28
        %s264 = smul.u32 2, %s263
        %p265 = scmp.lt.s32.totalorder %s26, 0
        %s266 = scalar_select %p265, %s26, 0
        %s267 = smul.addr %s266, 4
        %s268 = scalar_lea.vmem %s2, %s267
        %p269 = scmp.lt.s32.totalorder %s26, 0
        %s270 = scalar_select %p269, %s26, 0
        %s271 = smul.addr %s270, 4
        %s272 = scalar_lea.vmem %s3, %s271
        %p273 = scmp.eq.s32.totalorder %s27, 0
        %p274 = scmp.eq.s32.totalorder %s28, 0
        %p275 = pnand %p273, %p274
        %p276 = pneg %p275
        %p277 = scmp.eq.s32.totalorder %s27, 1
        %p278 = pnand %p277, %p274
        %p279 = pneg %p278
        // Predicated region
        $region37: #{tpu_custom_call.1} parent=27 // pred_check
          _
        $region38: #{tpu_custom_call.1} parent=27 // pred_check_branch
          %281 = sbr.rel (%p275) target = $region40
        $region39: #{tpu_custom_call.1} parent=27 // pred_region
          %282 = vst [vmem:[#allocation2] sm:$0xff] 0.0
          %283 = vst [vmem:[#allocation3] sm:$0xff] 0.0
        $region40: #{tpu_custom_call.1} parent=27 // pred_fallthru
          _
        %v284 = vld [vmem:[%s221] sm:$0xff]
        %v285 = vld [vmem:[%s230] sm:$0xf]
        %v286 = vunpack.c.l.bf16 %v285
        %v287 = vmul.f32 %v284, 0.5
        %v288 = vtanh.pop %v287
        %v289 = vmul.f32 %v288, 0.5
        %v290 = vadd.f32 %v289, 0.5
        %v291 = vld [vmem:[#allocation2] sm:$0xff]
        %v292 = vmul.f32 %v290, %v286
        %v293 = vadd.f32 %v291, %v292
        %294 = vst [vmem:[#allocation2] sm:$0xff] %v293
        %v295 = vld [vmem:[#allocation3] sm:$0xff]
        %v296 = vmul.f32 %v290, %v290
        %v297 = vmul.f32 %v286, %v286
        %v298 = vadd.f32 %v296, %v297
        %v299 = vadd.f32 %v295, %v298
        %300 = vst [vmem:[#allocation3] sm:$0xff] %v299
        // Predicated region
        $region41: #{tpu_custom_call.1} parent=27 // pred_check
          _
        $region42: #{tpu_custom_call.1} parent=27 // pred_check_branch
          %302 = sbr.rel (%p278) target = $region44
        $region43: #{tpu_custom_call.1} parent=27 // pred_region
          %v303 = vld [vmem:[#allocation2] sm:$0xff]
          %v305 = vcombine.high %v303, %v303
          %vm307 = vcmask 1043456
          %v308 = vsel %vm307, %v303, 0.0
          %v309 = vsel %vm307, %v305, 0.0
          %v310 = vadd.f32 %v308, %v309
          %311 = vadd.xlane.f32.xlu0 %v310
          %v312 = vpop.xlane.xlu0 %311
          %vm313 = vcmask 3072
          %314 = vst.msk [vmem:[%s268] sm:$0xf] %vm313, %v312
          %v315 = vld [vmem:[#allocation3] sm:$0xff]
          %v317 = vcombine.high %v315, %v315
          %v319 = vsel %vm307, %v315, 0.0
          %v320 = vsel %vm307, %v317, 0.0
          %v321 = vadd.f32 %v319, %v320
          %322 = vadd.xlane.f32.xlu0 %v321
          %v323 = vpop.xlane.xlu0 %322
          %324 = vst.msk [vmem:[%s272] sm:$0xf] %vm313, %v323
        $region44: #{tpu_custom_call.1} parent=27 // pred_fallthru
          _
        %p325 = scmp.lt.s32.totalorder %s26, 0
        %s326 = scalar_select %p325, %s26, 0
        %s327 = smul.addr %s326, 4
        %s328 = scalar_lea.vmem %s2, %s327
        %p329 = scmp.lt.s32.totalorder %s26, 0
        %s330 = scalar_select %p329, %s26, 0
        %s331 = smul.addr %s330, 4
        %s332 = scalar_lea.vmem %s3, %s331
        // Predicated region
        $region45: #{tpu_custom_call.1} parent=27 // pred_check
          %p333 = pneg %p118
        $region46: #{tpu_custom_call.1} parent=27 // pred_check_branch
          %335 = sbr.rel (%p333) target = $region48
        $region47: #{tpu_custom_call.1} parent=27 // pred_region
          _
        $region48: #{tpu_custom_call.1} parent=27 // pred_fallthru
          _
        // Predicated region
        $region49: #{tpu_custom_call.1} parent=27 // pred_check
          %p336 = pneg %p144
        $region50: #{tpu_custom_call.1} parent=27 // pred_check_branch
          %338 = sbr.rel (%p336) target = $region52
        $region51: #{tpu_custom_call.1} parent=27 // pred_region
          _
        $region52: #{tpu_custom_call.1} parent=27 // pred_fallthru
          _
        // Predicated region
        $region53: #{tpu_custom_call.1} parent=27 // pred_check
          %p339 = pneg %p118
        $region54: #{tpu_custom_call.1} parent=27 // pred_check_branch
          %341 = sbr.rel (%p339) target = $region56
        $region55: #{tpu_custom_call.1} parent=27 // pred_region
          %p342 = scmp.lt.s32.totalorder %s26, 0
          %s343 = scalar_select %p342, %s26, 0
          %s344 = smul.addr %s343, 4
          %s345 = scalar_lea.vmem %s2, %s344
        $region56: #{tpu_custom_call.1} parent=27 // pred_fallthru
          _
        // Predicated region
        $region57: #{tpu_custom_call.1} parent=27 // pred_check
          %p346 = pneg %p144
        $region58: #{tpu_custom_call.1} parent=27 // pred_check_branch
          %348 = sbr.rel (%p346) target = $region60
        $region59: #{tpu_custom_call.1} parent=27 // pred_region
          %p349 = scmp.lt.s32.totalorder %s26, 0
          %s350 = scalar_select %p349, %s26, 0
          %s351 = smul.addr %s350, 4
          %s352 = scalar_lea.vmem %s3, %s351
        $region60: #{tpu_custom_call.1} parent=27 // pred_fallthru
          _
      $region28: #{tpu_custom_call.1} parent=5 // pred_fallthru
        _
      %p353 = scmp.le.s32.totalorder 2, %s16
      // Predicated region
      $region61: #{tpu_custom_call.1} parent=5 // pred_check
        %p354 = pneg %p353
      $region62: #{tpu_custom_call.1} parent=5 // pred_check_branch
        %356 = sbr.rel (%p354) target = $region64
      $region63: #{tpu_custom_call.1} parent=5 // pred_region
        %s357 = ssub.s32 %s16, 2
      $region64: #{tpu_custom_call.1} parent=5 // pred_fallthru
        _
    $region6: #{tpu_custom_call.1} parent=1 // loop_footer
      %s20 = sadd.s32 1, %s16
    $region7: #{tpu_custom_call.1} parent=1 // loop_footer_branch
      %15 = sbr.rel target = $region3
    $region8: #{tpu_custom_call.1} parent=1 // loop_exit
      _
    %358 = vsyncpa [#allocation5], 1
    %s359 = scalar_lea.sflag [#allocation5], 1
    %360 = vsyncpa %s359, 1
    %361 = vsyncpa [#allocation7], 1
    %s362 = scalar_lea.sflag [#allocation7], 1
    %363 = vsyncpa %s362, 1

</llo_original>
